<compile_context>
chip_gen: v6e
topology: v6e:2x2x1
jax: 0.10.0
libtpu: 0.0.40
codegen_flags: <defaults>
</compile_context>

<pallas_src>
import functools

import jax
import jax.numpy as jnp
from jax.experimental import pallas as pl
from jax.experimental.pallas import tpu as pltpu


def _plug_kernel(xb_ref, y_ref, wy_ref, out_ref, *, compute_dtype):
    """out = y @ Wy (bf16 MXU, f32 acc) + precomputed (x @ Wx + bias)."""
    bt, tt, dy = y_ref.shape
    n = wy_ref.shape[-1]
    w = wy_ref[...]
    if bt == 1:
        # Single batch per block: plain 2-D matmul, xb broadcasts over rows.
        y2 = y_ref[0].astype(compute_dtype)                      # (tt, dy)
        acc = jnp.dot(y2, w, preferred_element_type=jnp.float32)  # (tt, n)
        out_ref[0] = (acc + xb_ref[0]).astype(out_ref.dtype)
    else:
        # Batch-spanning block: tt % 8 == 0 is guaranteed by the wrapper, so
        # merging (bt, tt) into the sublane dim is a layout-free reshape.
        y2 = y_ref[...].astype(compute_dtype).reshape(bt * tt, dy)
        acc = jnp.dot(y2, w, preferred_element_type=jnp.float32)
        acc = acc.reshape(bt, tt, n) + xb_ref[...]               # bcast over tt
        out_ref[...] = acc.astype(out_ref.dtype)


def self_attention_encoder_plug(x, y, weight, bias, *, target_rows=2048,
                                compute_dtype=jnp.bfloat16, out_dtype=None):
    """Forward of SelfAttentionEncoderPlug.

    x      : (B, Dx)            per-batch vector (stacked over time in torch)
    y      : (B, T, Dy)         per-timestep features
    weight : (out_hs, Dx + Dy)  nn.Linear weight
    bias   : (out_hs,)          nn.Linear bias
    returns: (B, T, out_hs)
    """
    B, Dx = x.shape
    By, T, Dy = y.shape
    assert By == B
    out_hs, in_hs = weight.shape
    assert in_hs == Dx + Dy
    if out_dtype is None:
        out_dtype = x.dtype

    # Split weight so the concat is never materialized.
    w_t = weight.T                                    # (in_hs, out_hs)
    wx = w_t[:Dx].astype(jnp.float32)                 # (Dx, out_hs)
    wy = w_t[Dx:].astype(compute_dtype)               # (Dy, out_hs) for the MXU

    # Per-batch x contribution + bias, precomputed in f32 (tiny XLA matmul).
    xb = x.astype(jnp.float32) @ wx + bias.astype(jnp.float32)[None, :]
    xb = xb.reshape(B, 1, out_hs)

    # Tile selection (mem-bound kernel -> big row tiles, no pad copies).
    if T % 8 == 0 and T <= target_rows:
        # Small-T regime: span several batches per block.
        tt = T
        bt = max(1, min(B, target_rows // T))
        if B >= 2:
            bt = min(bt, pl.cdiv(B, 2))   # keep >=2 batch programs (megacore)
    else:
        bt = 1
        # Full-T block (legal even when T % 8 != 0) or 8-aligned big tiles;
        # the ragged last block is handled by Pallas masking.
        tt = T if T <= target_rows else target_rows

    grid = (pl.cdiv(B, bt), pl.cdiv(T, tt))

    kernel = functools.partial(_plug_kernel, compute_dtype=compute_dtype)
    out = pl.pallas_call(
        kernel,
        out_shape=jax.ShapeDtypeStruct((B, T, out_hs), out_dtype),
        grid_spec=pltpu.PrefetchScalarGridSpec(
            num_scalar_prefetch=0,
            grid=grid,
            in_specs=[
                pl.BlockSpec((bt, 1, out_hs), lambda b, j: (b, 0, 0)),   # x@Wx+b
                pl.BlockSpec((bt, tt, Dy), lambda b, j: (b, j, 0)),      # y tile
                pl.BlockSpec((Dy, out_hs), lambda b, j: (0, 0)),         # Wy
            ],
            out_specs=pl.BlockSpec((bt, tt, out_hs), lambda b, j: (b, j, 0)),
        ),
        compiler_params=pltpu.CompilerParams(
            dimension_semantics=("parallel", "parallel"),
            vmem_limit_bytes=48 * 1024 * 1024,
        ),
    )(xb, y, wy)
    return out


if __name__ == "__main__":
    # Small shapes consistent with the module's forward.  B=3 exercises both
    # the batch-spanning block path and a masked ragged edge block.
    B, T = 3, 8
    Dx, Dy = 16, 16
    in_hs = Dx + Dy          # 32
    out_hs = 32

    key = jax.random.PRNGKey(0)
    kx, ky, kw, kb = jax.random.split(key, 4)

    x = jax.random.normal(kx, (B, Dx), dtype=jnp.float32)
    y = jax.random.normal(ky, (B, T, Dy), dtype=jnp.float32)

    # nn.Linear(in_hs, out_hs)-shaped parameters.
    weight = jax.random.normal(kw, (out_hs, in_hs), dtype=jnp.float32) * 0.1
    bias = jax.random.normal(kb, (out_hs,), dtype=jnp.float32) * 0.1

    out = self_attention_encoder_plug(x, y, weight, bias)
    out = jax.block_until_ready(out)
    assert out.shape == (B, T, out_hs)

    # Pure-f32 reference of the torch forward (loose tol: y path is bf16).
    x_st = jnp.broadcast_to(x[:, None, :], (B, T, Dx))
    ref_f32 = jnp.concatenate([x_st, y], axis=-1) @ weight.T + bias
    assert jnp.allclose(out, ref_f32, atol=2e-2, rtol=2e-2)

    # Tight check against a precision-matched reference (f32 x-path,
    # bf16 y-path with f32 accumulation), mirroring the kernel's arithmetic.
    wx_ref = weight.T[:Dx].astype(jnp.float32)
    wy_ref = weight.T[Dx:].astype(jnp.bfloat16)
    y_part = jax.lax.dot_general(
        y.astype(jnp.bfloat16), wy_ref, (((2,), (0,)), ((), ())),
        preferred_element_type=jnp.float32)
    ref_mixed = y_part + (x @ wx_ref + bias)[:, None, :]
    assert jnp.allclose(out, ref_mixed, atol=1e-3, rtol=1e-3)

    print("KERNEL_OK")
</pallas_src>

<mosaic_0001>
module attributes {stable_mosaic.version = 11 : i64} {
  func.func @_plug_kernel(%arg0: i32, %arg1: i32, %arg2: memref<2x1x32xf32, #tpu.memory_space<vmem>>, %arg3: memref<2x8x16xf32, #tpu.memory_space<vmem>>, %arg4: memref<16x32xbf16, #tpu.memory_space<vmem>>, %arg5: memref<2x8x32xf32, #tpu.memory_space<vmem>>) attributes {dimension_semantics = [#tpu.dimension_semantics<parallel>, #tpu.dimension_semantics<parallel>], iteration_bounds = array<i64: 2, 1>, scalar_prefetch = 0 : i64, scratch_operands = 0 : i64, tpu.core_type = #tpu.core_type<tc>, window_params = [{transform_indices = @transform_0, window_bounds = array<i64: 2, 1, 32>}, {transform_indices = @transform_1, window_bounds = array<i64: 2, 8, 16>}, {pipeline_mode = #tpu.pipeline_mode<synchronous>, transform_indices = @transform_2, window_bounds = array<i64: 16, 32>}, {transform_indices = @transform_3, window_bounds = array<i64: 2, 8, 32>}]} {
    %c0 = arith.constant 0 : index
    %c0_0 = arith.constant 0 : index
    %0 = vector.load %arg4[%c0, %c0_0] : memref<16x32xbf16, #tpu.memory_space<vmem>>, vector<16x32xbf16>
    %c0_1 = arith.constant 0 : index
    %c0_2 = arith.constant 0 : index
    %c0_3 = arith.constant 0 : index
    %1 = vector.load %arg3[%c0_1, %c0_2, %c0_3] : memref<2x8x16xf32, #tpu.memory_space<vmem>>, vector<2x8x16xf32>
    %2 = arith.truncf %1 : vector<2x8x16xf32> to vector<2x8x16xbf16>
    %3 = vector.shape_cast %2 : vector<2x8x16xbf16> to vector<16x16xbf16>
    %cst = arith.constant dense<0.000000e+00> : vector<16x32xf32>
    %4 = tpu.matmul %3, %0, %cst {dimension_numbers = #tpu.dot_dimension_numbers<[1], [0], [0], [1], [0, 0, 1, 1], [], []>} : vector<16x16xbf16>, vector<16x32xbf16>, vector<16x32xf32> -> vector<16x32xf32>
    %5 = vector.shape_cast %4 : vector<16x32xf32> to vector<2x8x32xf32>
    %c0_4 = arith.constant 0 : index
    %c0_5 = arith.constant 0 : index
    %c0_6 = arith.constant 0 : index
    %6 = vector.load %arg2[%c0_4, %c0_5, %c0_6] : memref<2x1x32xf32, #tpu.memory_space<vmem>>, vector<2x1x32xf32>
    %7 = vector.broadcast %6 : vector<2x1x32xf32> to vector<2x8x32xf32>
    %8 = arith.addf %5, %7 : vector<2x8x32xf32>
    %c0_7 = arith.constant 0 : index
    %c0_8 = arith.constant 0 : index
    %c0_9 = arith.constant 0 : index
    %9 = vector.load %arg5[%c0_7, %c0_8, %c0_9] : memref<2x8x32xf32, #tpu.memory_space<vmem>>, vector<2x8x32xf32>
    tpu.vector_store %arg5[%c0_7, %c0_8, %c0_9], %8 {strides = array<i32>} : memref<2x8x32xf32, #tpu.memory_space<vmem>>, vector<2x8x32xf32>,
    return
  }
  func.func @transform_0(%arg0: i32, %arg1: i32) -> (i32, i32, i32) {
    %c0_i32 = arith.constant 0 : i32
    %c0_i32_0 = arith.constant 0 : i32
    %c0_i32_1 = arith.constant 0 : i32
    return %arg0, %c0_i32, %c0_i32_0 : i32, i32, i32
  }
  func.func @transform_1(%arg0: i32, %arg1: i32) -> (i32, i32, i32) {
    %c0_i32 = arith.constant 0 : i32
    %c0_i32_0 = arith.constant 0 : i32
    return %arg0, %arg1, %c0_i32 : i32, i32, i32
  }
  func.func @transform_2(%arg0: i32, %arg1: i32) -> (i32, i32) {
    %c0_i32 = arith.constant 0 : i32
    %c0_i32_0 = arith.constant 0 : i32
    %c0_i32_1 = arith.constant 0 : i32
    return %c0_i32, %c0_i32_0 : i32, i32
  }
  func.func @transform_3(%arg0: i32, %arg1: i32) -> (i32, i32, i32) {
    %c0_i32 = arith.constant 0 : i32
    %c0_i32_0 = arith.constant 0 : i32
    return %arg0, %arg1, %c0_i32 : i32, i32, i32
  }
}

</mosaic_0001>

<llo_original>
// kernel: tpu_custom_call.1
$region0: #{tpu_custom_call.1}
  #allocation0 [shape = 'u32[]', space=smem, size = 0x4, offset = 0x4, fixed_abs, tag = 'smem constant byte address 0x4 - core index']
  #allocation1 [shape = 'u32[144,128]{1,0:T(1,128)}', space=vmem, size = 0x12000, scoped, tag = 'internal scratch']
  %s0 = inlined_call_operand.hbm [shape: f32[3,1,32], index: 0, kind: input, shape index: {}]
  %s1 = inlined_call_operand.hbm [shape: f32[3,8,16], index: 1, kind: input, shape index: {}]
  %s2 = inlined_call_operand.hbm [shape: bf16[16,32], index: 2, kind: input, shape index: {}]
  %s3 = inlined_call_operand.hbm [shape: f32[3,8,32], index: 3, kind: output, shape index: {}]
  %s4 = sld [smem:[#allocation0]]
  $region57: #{tpu_custom_call.1} parent=0
    _
  %s6 = ssub.s32 1, %s4
  %s7 = scalar_select 0, %s6, %s4
  $region1: #{tpu_custom_call.1} parent=0
    #allocation2 [shape = 'u8[2048]{0}', space=vmem, size = 0x800, scoped, tag = 'input window, operand 0']
    #allocation3 [shape = 's32[2]{0}', space=sflag, size = 0x8, scoped, tag = 'scoped memory for tpu_custom_call.1']
    #allocation4 [shape = 's32[2]{0}', space=sflag, size = 0x8, scoped, tag = 'scoped memory for tpu_custom_call.1']
    #allocation5 [shape = 'u8[16384]{0}', space=vmem, size = 0x4000, scoped, tag = 'input window, operand 1']
    #allocation6 [shape = 's32[2]{0}', space=sflag, size = 0x8, scoped, tag = 'scoped memory for tpu_custom_call.1']
    #allocation7 [shape = 'u8[4096]{0}', space=vmem, size = 0x1000, scoped, tag = 'input window, operand 2, single buffered']
    #allocation8 [shape = 'u8[16384]{0}', space=vmem, size = 0x4000, scoped, tag = 'output window, operand 0']
    %8 = vsyncpa [#allocation3], 0
    %s9 = scalar_lea.sflag [#allocation3], 1
    %10 = vsyncpa %s9, 0
    %11 = vsyncpa [#allocation6], 0
    %s12 = scalar_lea.sflag [#allocation6], 1
    %13 = vsyncpa %s12, 0
    %14 = vsyncpa [#allocation4], 0
    %s15 = scalar_lea.sflag [#allocation4], 1
    %16 = vsyncpa %s15, 0
    loop: start=0, step=1, limit=4
    $region2: #{tpu_custom_call.1} parent=1 // loop_pre_header
      _
    $region3: #{tpu_custom_call.1} parent=1 // loop_header
      %s18 = sphi 0, %s22
      %p19 = scmp.ge.s32.totalorder %s18, 4
      %s25 = sphi 0, %s37
      %s26 = sphi 0, %s33
      %s27 = sphi 0, %s25
      %s28 = sphi 0, %s26
      %s29 = sphi 0, %s27
      %s30 = sphi 0, %s28
      %s40 = sphi 0, %s42
      %s43 = sphi 0, %s40
      %s44 = sphi 0, %s43
      %s60 = sphi 0, %s44
      %s68 = sphi 0, %s70
      %s71 = sphi 0, %s68
      %s72 = sphi 0, %s71
      %s88 = sphi 0, %s72
      %s92 = sphi 0, %s92
      %s94 = sphi 0, %s92
      %s95 = sphi 0, %s94
      %s109 = sphi 0, %s95
      %s117 = sphi 0, %s119
      %s120 = sphi 0, %s117
      %s121 = sphi 0, %s120
      %s137 = sphi 0, %s121
    $region4: #{tpu_custom_call.1} parent=1 // loop_header_branch
      %21 = sbr.rel (%p19) target = $region8
    $region5: #{tpu_custom_call.1} parent=1 // loop_body
      %s23 = ssub.s32 %s18, 1
      %s24 = ssub.s32 %s18, 2
      %s31 = sadd.s32 1, %s26
      %p32 = scmp.ge.s32.totalorder %s31, 1
      %s33 = scalar_select %p32, 0, %s31
      %s34 = sadd.s32 1, %s25
      %s35 = scalar_select %p32, %s34, %s25
      %p36 = scmp.ge.s32.totalorder %s35, 2
      %s37 = scalar_select %p36, 0, %s35
      %s38 = ssub.s32 %s25, %s37
      %p39 = scmp.eq.s32.totalorder %s38, 0
      %s41 = sadd.s32 %s40, 1
      %s42 = scalar_select %p39, %s40, %s41
      %p45 = pneg %p39
      %p46 = scmp.eq.s32.totalorder %s18, 1
      %p47 = por %p45, %p46
      %p48 = scmp.ne.s32.totalorder %s40, %s43
      %p49 = scmp.eq.s32.totalorder %s18, 0
      %p50 = por %p48, %p49
      %p51 = scmp.ne.s32.totalorder %s40, %s43
      %p52 = scmp.eq.s32.totalorder %s23, 1
      %p53 = por %p51, %p52
      %p54 = scmp.ne.s32.totalorder %s43, %s44
      %p55 = scmp.eq.s32.totalorder %s23, 0
      %p56 = por %p54, %p55
      %p57 = scmp.ne.s32.totalorder %s43, %s44
      %p58 = scmp.eq.s32.totalorder %s24, 1
      %p59 = por %p57, %p58
      %p61 = scmp.ne.s32.totalorder %s44, %s60
      %p62 = scmp.eq.s32.totalorder %s24, 0
      %p63 = por %p61, %p62
      %s64 = ssub.s32 %s25, %s37
      %s65 = ssub.s32 %s26, %s33
      %s66 = sor.u32 %s64, %s65
      %p67 = scmp.eq.s32.totalorder %s66, 0
      %s69 = sadd.s32 %s68, 1
      %s70 = scalar_select %p67, %s68, %s69
      %p73 = pneg %p67
      %p74 = scmp.eq.s32.totalorder %s18, 1
      %p75 = por %p73, %p74
      %p76 = scmp.ne.s32.totalorder %s68, %s71
      %p77 = scmp.eq.s32.totalorder %s18, 0
      %p78 = por %p76, %p77
      %p79 = scmp.ne.s32.totalorder %s68, %s71
      %p80 = scmp.eq.s32.totalorder %s23, 1
      %p81 = por %p79, %p80
      %p82 = scmp.ne.s32.totalorder %s71, %s72
      %p83 = scmp.eq.s32.totalorder %s23, 0
      %p84 = por %p82, %p83
      %p85 = scmp.ne.s32.totalorder %s71, %s72
      %p86 = scmp.eq.s32.totalorder %s24, 1
      %p87 = por %p85, %p86
      %p89 = scmp.ne.s32.totalorder %s72, %s88
      %p90 = scmp.eq.s32.totalorder %s24, 0
      %p91 = por %p89, %p90
      %s93 = sadd.s32 %s92, 1
      %p96 = scmp.eq.s32.totalorder %s18, 1
      %p97 = scmp.ne.s32.totalorder %s92, %s94
      %p98 = scmp.eq.s32.totalorder %s18, 0
      %p99 = por %p97, %p98
      %p100 = scmp.ne.s32.totalorder %s92, %s94
      %p101 = scmp.eq.s32.totalorder %s23, 1
      %p102 = por %p100, %p101
      %p103 = scmp.ne.s32.totalorder %s94, %s95
      %p104 = scmp.eq.s32.totalorder %s23, 0
      %p105 = por %p103, %p104
      %p106 = scmp.ne.s32.totalorder %s94, %s95
      %p107 = scmp.eq.s32.totalorder %s24, 1
      %p108 = por %p106, %p107
      %p110 = scmp.ne.s32.totalorder %s95, %s109
      %p111 = scmp.eq.s32.totalorder %s24, 0
      %p112 = por %p110, %p111
      %s113 = ssub.s32 %s25, %s37
      %s114 = ssub.s32 %s26, %s33
      %s115 = sor.u32 %s113, %s114
      %p116 = scmp.eq.s32.totalorder %s115, 0
      %s118 = sadd.s32 %s117, 1
      %s119 = scalar_select %p116, %s117, %s118
      %p122 = pneg %p116
      %p123 = scmp.eq.s32.totalorder %s18, 1
      %p124 = por %p122, %p123
      %p125 = scmp.ne.s32.totalorder %s117, %s120
      %p126 = scmp.eq.s32.totalorder %s18, 0
      %p127 = por %p125, %p126
      %p128 = scmp.ne.s32.totalorder %s117, %s120
      %p129 = scmp.eq.s32.totalorder %s23, 1
      %p130 = por %p128, %p129
      %p131 = scmp.ne.s32.totalorder %s120, %s121
      %p132 = scmp.eq.s32.totalorder %s23, 0
      %p133 = por %p131, %p132
      %p134 = scmp.ne.s32.totalorder %s120, %s121
      %p135 = scmp.eq.s32.totalorder %s24, 1
      %p136 = por %p134, %p135
      %p138 = scmp.ne.s32.totalorder %s121, %s137
      %p139 = scmp.eq.s32.totalorder %s24, 0
      %p140 = por %p138, %p139
      %p141 = scmp.le.s32.totalorder 1, %s18
      %p142 = scmp.lt.s32.totalorder %s18, 3
      %p143 = pnand %p141, %p142
      %p144 = pneg %p143
      // Predicated region
      $region9: #{tpu_custom_call.1} parent=5 // pred_check
        _
      $region10: #{tpu_custom_call.1} parent=5 // pred_check_branch
        %146 = sbr.rel (%p143) target = $region12
      $region11: #{tpu_custom_call.1} parent=5 // pred_region
        %s147 = ssub.s32 %s18, 1
        // Predicated region
        $region13: #{tpu_custom_call.1} parent=11 // pred_check
          %p148 = pneg %p105
        $region14: #{tpu_custom_call.1} parent=11 // pred_check_branch
          %150 = sbr.rel (%p148) target = $region16
        $region15: #{tpu_custom_call.1} parent=11 // pred_region
          %s152 = ssub.s32 128, 128
          %153 = vsyncadd [#allocation6], %s152
          %s154 = sshll.u32 [#allocation7], 4
          %s155 = int_to_ptr.vmem [resolvable:$true] %s154
          %160 = dma.hbm_to_vmem [thread:$0]  %s2, 128, %s155, [#allocation6], 64, 64, 4
        $region16: #{tpu_custom_call.1} parent=11 // pred_fallthru
          _
      $region12: #{tpu_custom_call.1} parent=5 // pred_fallthru
        _
      %p161 = scmp.lt.s32.totalorder %s18, 2
      // Predicated region
      $region17: #{tpu_custom_call.1} parent=5 // pred_check
        %p162 = pneg %p161
      $region18: #{tpu_custom_call.1} parent=5 // pred_check_branch
        %164 = sbr.rel (%p162) target = $region20
      $region19: #{tpu_custom_call.1} parent=5 // pred_region
        // Predicated region
        $region21: #{tpu_custom_call.1} parent=19 // pred_check
          %p165 = pneg %p50
        $region22: #{tpu_custom_call.1} parent=19 // pred_check_branch
          %167 = sbr.rel (%p165) target = $region24
        $region23: #{tpu_custom_call.1} parent=19 // pred_region
          %s168 = sand.u32 %s40, 1
          %s169 = scalar_lea.sflag [#allocation3], %s168
          %s170 = sand.u32 %s40, 1
          %s171 = smul.addr %s170, 2
          %s172 = scalar_lea.vmem [#allocation2], %s171
          %s173 = smul.u32 2, %s25
          %s174 = ssub.s32 3, %s173
          %p175 = scmp.lt.s32.totalorder %s174, 2
          %s176 = scalar_select %p175, %s174, 2
          %s177 = smul.u32 16, %s176
          %s179 = ssub.s32 32, %s177
          %180 = vsyncadd %s169, %s179
          %p181 = scmp.ne.s32.totalorder 0, %s177
          %s182 = smul.addr %s173, 16
          %s183 = scalar_lea.hbm %s0, %s182
          %s184 = sshll.u32 %s172, 4
          %s185 = int_to_ptr.vmem [resolvable:$true] %s184
          %s186 = sshll.u32 %s176, 4
          %190 = dma.hbm_to_vmem [thread:$0]  (%p181), %s183, %s186, %s185, %s169, 16, 16, 1
        $region24: #{tpu_custom_call.1} parent=19 // pred_fallthru
          _
        // Predicated region
        $region25: #{tpu_custom_call.1} parent=19 // pred_check
          %p191 = pneg %p78
        $region26: #{tpu_custom_call.1} parent=19 // pred_check_branch
          %193 = sbr.rel (%p191) target = $region28
        $region27: #{tpu_custom_call.1} parent=19 // pred_region
          %s194 = sand.u32 %s18, 1
          %s195 = scalar_lea.sflag [#allocation6], %s194
          %s196 = sand.u32 %s68, 1
          %s197 = smul.addr %s196, 16
          %s198 = scalar_lea.vmem [#allocation5], %s197
          %s199 = smul.u32 2, %s25
          %s200 = ssub.s32 3, %s199
          %p201 = scmp.lt.s32.totalorder %s200, 2
          %s202 = scalar_select %p201, %s200, 2
          %s203 = smul.u32 128, %s202
          %s205 = ssub.s32 256, %s203
          %206 = vsyncadd %s195, %s205
          %p207 = scmp.ne.s32.totalorder 0, %s203
          %s208 = sadd.s32 %s26, %s199
          %s209 = smul.addr %s208, 128
          %s210 = scalar_lea.hbm %s1, %s209
          %s211 = smul.u32 8, %s202
          %s212 = sshll.u32 %s198, 4
          %s213 = int_to_ptr.vmem [resolvable:$true] %s212
          %s214 = sshll.u32 %s211, 4
          %218 = dma.hbm_to_vmem [thread:$0]  (%p207), %s210, %s214, %s213, %s195, 128, 128, 8
        $region28: #{tpu_custom_call.1} parent=19 // pred_fallthru
          _
      $region20: #{tpu_custom_call.1} parent=5 // pred_fallthru
        _
      %p219 = scmp.le.s32.totalorder 1, %s18
      %p220 = scmp.lt.s32.totalorder %s18, 3
      %p221 = pnand %p219, %p220
      %p222 = pneg %p221
      // Predicated region
      $region29: #{tpu_custom_call.1} parent=5 // pred_check
        _
      $region30: #{tpu_custom_call.1} parent=5 // pred_check_branch
        %224 = sbr.rel (%p221) target = $region32
      $region31: #{tpu_custom_call.1} parent=5 // pred_region
        %s225 = ssub.s32 %s18, 1
        %s226 = sand.u32 %s43, 1
        %s227 = scalar_lea.sflag [#allocation3], %s226
        %s228 = sand.u32 %s43, 1
        %s229 = smul.addr %s228, 2
        %s230 = scalar_lea.vmem [#allocation2], %s229
        // Predicated region
        $region33: #{tpu_custom_call.1} parent=31 // pred_check
          %p231 = pneg %p56
        $region34: #{tpu_custom_call.1} parent=31 // pred_check_branch
          %233 = sbr.rel (%p231) target = $region36
        $region35: #{tpu_custom_call.1} parent=31 // pred_region
          %234 = dma.done %s227, 32
        $region36: #{tpu_custom_call.1} parent=31 // pred_fallthru
          _
        %s235 = sand.u32 %s23, 1
        %s236 = scalar_lea.sflag [#allocation6], %s235
        %s237 = sand.u32 %s71, 1
        %s238 = smul.addr %s237, 16
        %s239 = scalar_lea.vmem [#allocation5], %s238
        // Predicated region
        $region37: #{tpu_custom_call.1} parent=31 // pred_check
          %p240 = pneg %p84
        $region38: #{tpu_custom_call.1} parent=31 // pred_check_branch
          %242 = sbr.rel (%p240) target = $region40
        $region39: #{tpu_custom_call.1} parent=31 // pred_region
          %243 = dma.done %s236, 256
        $region40: #{tpu_custom_call.1} parent=31 // pred_fallthru
          _
        // Predicated region
        $region41: #{tpu_custom_call.1} parent=31 // pred_check
          %p244 = pneg %p105
        $region42: #{tpu_custom_call.1} parent=31 // pred_check_branch
          %246 = sbr.rel (%p244) target = $region44
        $region43: #{tpu_custom_call.1} parent=31 // pred_region
          %247 = dma.done [#allocation6], 128
        $region44: #{tpu_custom_call.1} parent=31 // pred_fallthru
          _
        %s248 = sand.u32 %s43, 1
        %s249 = scalar_lea.sflag [#allocation3], %s248
        %s250 = sand.u32 %s43, 1
        %s251 = smul.addr %s250, 2
        %s252 = scalar_lea.vmem [#allocation2], %s251
        %p253 = pneg %p56
        %p254 = pneg %p53
        %s255 = sand.u32 %s23, 1
        %s256 = scalar_lea.sflag [#allocation6], %s255
        %s257 = sand.u32 %s71, 1
        %s258 = smul.addr %s257, 16
        %s259 = scalar_lea.vmem [#allocation5], %s258
        %p260 = pneg %p84
        %p261 = pneg %p81
        %p262 = pneg %p105
        %p263 = pneg %p102
        %p264 = pneg %p133
        %p265 = pneg %p130
        %s266 = sand.u32 %s120, 1
        %s267 = scalar_lea.sflag [#allocation4], %s266
        %s268 = sand.u32 %s120, 1
        %s269 = smul.addr %s268, 16
        %s270 = scalar_lea.vmem [#allocation8], %s269
        %s271 = smul.u32 2, %s27
        %s272 = ssub.s32 3, %s271
        %p273 = scmp.lt.s32.totalorder %s272, 2
        %s274 = scalar_select %p273, %s272, 2
        %s275 = smul.u32 16, %s274
        %s276 = smul.u32 2, %s27
        %s277 = ssub.s32 3, %s276
        %p278 = scmp.lt.s32.totalorder %s277, 2
        %s279 = scalar_select %p278, %s277, 2
        %s280 = smul.u32 128, %s279
        %s281 = smul.u32 2, %s27
        %s282 = ssub.s32 3, %s281
        %p283 = scmp.lt.s32.totalorder %s282, 2
        %s284 = scalar_select %p283, %s282, 2
        %s285 = smul.u32 128, %s284
        %v287 = vld [vmem:[#allocation7] sm:$0xf]
        %v288 = vld [vmem:[#allocation7 + $0x4] sm:$0xf]
        %v289 = vld [vmem:[%s239] sm:$0xff]
        %v290 = vld [vmem:[%s239 + $0x8] sm:$0xff]
        %v291 = vpack.c.bf16 %v289, %v289
        %v292 = vpack.c.bf16 %v290, %v290
        %v295 = vunpack.c.l.b16 %v291
        %v296 = vunpack.c.l.b16 %v292
        %v297 = vpack.c.b16 %v296, %v295
        %v300 = vunpack.c.l.b16 %v287
        %v301 = vunpack.c.l.b16 %v288
        %v302 = vpack.c.b16 %v301, %v300
        %vm304 = vcmask 130048
        %v306 = vsel %vm304, %v297, 0
        %308 = vmatprep.subr.bf16.mxu0 0
        %309 = vmatpush1.bf16.msra.mxu0 0
        %310 = vmatprep.subr.bf16.mxu0 0
        %311 = vmatpush1.bf16.msra.mxu0 0
        %312 = vmatprep.subr.bf16.mxu0 0
        %313 = vmatpush1.bf16.msra.mxu0 0
        %314 = vmatprep.subr.bf16.mxu0 0
        %315 = vmatpush1.bf16.msra.mxu0 0
        %316 = vmatprep.subr.bf16.mxu0 0
        %317 = vmatpush1.bf16.msra.mxu0 0
        %318 = vmatprep.subr.bf16.mxu0 0
        %319 = vmatpush1.bf16.msra.mxu0 0
        %320 = vmatprep.subr.bf16.mxu0 0
        %321 = vmatpush1.bf16.msra.mxu0 0
        %322 = vmatprep.subr.bf16.mxu0 0
        %323 = vmatpush1.bf16.msra.mxu0 %v302
        %324 = vmatprep.subr.bf16.mxu0 0
        %325 = vmatpush2.bf16.msra.mxu0 0
        %326 = vmatprep.subr.bf16.mxu0 0
        %327 = vmatpush2.bf16.msra.mxu0 0
        %328 = vmatprep.subr.bf16.mxu0 0
        %329 = vmatpush2.bf16.msra.mxu0 0
        %330 = vmatprep.subr.bf16.mxu0 0
        %331 = vmatpush2.bf16.msra.mxu0 0
        %332 = vmatprep.subr.bf16.mxu0 0
        %333 = vmatpush2.bf16.msra.mxu0 0
        %334 = vmatprep.subr.bf16.mxu0 0
        %335 = vmatpush2.bf16.msra.mxu0 0
        %336 = vmatprep.subr.bf16.mxu0 0
        %337 = vmatpush2.bf16.msra.mxu0 0
        %338 = vmatprep.subr.bf16.mxu0 0
        %339 = vmatpush2.bf16.msra.mxu0 0
        %340 = vmatprep.mubr.bf16.mxu0 0
        %341 = vmatmul.mubr.bf16.gmra.mxu0 %v306
        %v342 = vpop.f32.mrf.mxu0
        %v343 = vadd.f32 0.0, %v342
        %v344 = vpop.f32.mrf.mxu0
        %v345 = vpop.f32.mrf.mxu0
        %v346 = vadd.f32 0.0, %v345
        %v347 = vpop.f32.mrf.mxu0
        %348 = vdwg.mxu0
        %v349 = vld [vmem:[%s230] sm:$0x1]
        %v350 = vld [vmem:[%s230 + $0x1] sm:$0x1]
        %v353 = vlaneseq
        %v354 = vshrl.u32 %v353, 7
        %v355 = vsub.s32 0, %v354
        %v356 = vrot.slane %v349, %v355
        %v357 = vlaneseq
        %v358 = vshrl.u32 %v357, 7
        %v359 = vsub.s32 0, %v358
        %v360 = vrot.slane %v350, %v359
        %v363 = vadd.f32 %v343, %v356
        %v364 = vadd.f32 %v346, %v360
        %vm365 = vcmask 261120
        %366 = vst.msk [vmem:[%s270] sm:$0xff] %vm365, %v363
        %367 = vst.msk [vmem:[%s270 + $0x8] sm:$0xff] %vm365, %v364
        %s368 = sand.u32 %s120, 1
        %s369 = scalar_lea.sflag [#allocation4], %s368
        %s370 = sand.u32 %s120, 1
        %s371 = smul.addr %s370, 16
        %s372 = scalar_lea.vmem [#allocation8], %s371
        // Predicated region
        $region45: #{tpu_custom_call.1} parent=31 // pred_check
          %p373 = pneg %p130
        $region46: #{tpu_custom_call.1} parent=31 // pred_check_branch
          %375 = sbr.rel (%p373) target = $region48
        $region47: #{tpu_custom_call.1} parent=31 // pred_region
          %s376 = smul.u32 2, %s27
          %s377 = ssub.s32 3, %s376
          %p378 = scmp.lt.s32.totalorder %s377, 2
          %s379 = scalar_select %p378, %s377, 2
          %s380 = smul.u32 128, %s379
          %s382 = ssub.s32 256, %s380
          %383 = vsyncadd %s369, %s382
          %p384 = scmp.ne.s32.totalorder 0, %s380
          %s385 = sadd.s32 %s28, %s376
          %s386 = smul.addr %s385, 128
          %s387 = scalar_lea.hbm %s3, %s386
          %s388 = smul.u32 8, %s379
          %s389 = sshll.u32 %s372, 4
          %s390 = int_to_ptr.vmem [resolvable:$true] %s389
          %s391 = sshll.u32 %s388, 4
          %395 = dma.vmem_to_hbm [thread:$0]  (%p384), %s390, %s391, %s387, %s369, 128, 128, 8
        $region48: #{tpu_custom_call.1} parent=31 // pred_fallthru
          _
      $region32: #{tpu_custom_call.1} parent=5 // pred_fallthru
        _
      %p396 = scmp.le.s32.totalorder 2, %s18
      // Predicated region
      $region49: #{tpu_custom_call.1} parent=5 // pred_check
        %p397 = pneg %p396
      $region50: #{tpu_custom_call.1} parent=5 // pred_check_branch
        %399 = sbr.rel (%p397) target = $region52
      $region51: #{tpu_custom_call.1} parent=5 // pred_region
        %s400 = ssub.s32 %s18, 2
        // Predicated region
        $region53: #{tpu_custom_call.1} parent=51 // pred_check
          %p401 = pneg %p136
        $region54: #{tpu_custom_call.1} parent=51 // pred_check_branch
          %403 = sbr.rel (%p401) target = $region56
        $region55: #{tpu_custom_call.1} parent=51 // pred_region
          %s404 = sand.u32 %s121, 1
          %s405 = scalar_lea.sflag [#allocation4], %s404
          %s406 = sand.u32 %s121, 1
          %s407 = smul.addr %s406, 16
          %s408 = scalar_lea.vmem [#allocation8], %s407
          %409 = dma.done %s405, 256
        $region56: #{tpu_custom_call.1} parent=51 // pred_fallthru
          _
      $region52: #{tpu_custom_call.1} parent=5 // pred_fallthru
        _
    $region6: #{tpu_custom_call.1} parent=1 // loop_footer
      %s22 = sadd.s32 1, %s18
    $region7: #{tpu_custom_call.1} parent=1 // loop_footer_branch
      %17 = sbr.rel target = $region3
    $region8: #{tpu_custom_call.1} parent=1 // loop_exit
      _
    %410 = vsyncpa [#allocation3], 1
    %s411 = scalar_lea.sflag [#allocation3], 1
    %412 = vsyncpa %s411, 1
    %413 = vsyncpa [#allocation6], 1
    %s414 = scalar_lea.sflag [#allocation6], 1
    %415 = vsyncpa %s414, 1
    %416 = vsyncpa [#allocation4], 1
    %s417 = scalar_lea.sflag [#allocation4], 1
    %418 = vsyncpa %s417, 1

</llo_original>
